<compile_context>
chip_gen: v6e
topology: v6e:2x2x1
jax: 0.10.0
libtpu: 0.0.40
codegen_flags: <defaults>
</compile_context>

<pallas_src>
import functools

import jax
import jax.numpy as jnp
from jax.experimental import pallas as pl
from jax.experimental.pallas import tpu as pltpu


def _round_up(x, m):
    return ((x + m - 1) // m) * m


def start_token_kernel(hs_ref, ho_ref, w1s_ref, w1o_ref, b1_ref, w2_ref, b2_ref,
                       out_ref):
    # classifier layer 1: Linear(2H -> H) without materializing the concat:
    #   z = [h_sub, h_obj] @ w1 + b1 = h_sub @ w1[:H] + h_obj @ w1[H:] + b1
    z = (jnp.dot(hs_ref[...], w1s_ref[...], preferred_element_type=jnp.float32)
         + jnp.dot(ho_ref[...], w1o_ref[...], preferred_element_type=jnp.float32)
         + b1_ref[...])                                   # (TM, H) f32
    z = jnp.maximum(z, 0.0)                               # ReLU

    # classifier layer 2: Linear(H -> num_labels), lane-padded to 128 wide.
    out = jnp.dot(z, w2_ref[...], preferred_element_type=jnp.float32) + b2_ref[...]
    out_ref[...] = out.astype(out_ref.dtype)              # (TM, Lpad)


def prepare_params(params):
    """One-time weight prep: split w1, lane-pad w2/b2. Call once per weight update."""
    H = params["b1"].shape[-1]
    L = params["w2"].shape[-1]
    Lpad = _round_up(L, 128)
    return dict(
        w1s=params["w1"][:H].astype(jnp.float32),                         # (H, H)
        w1o=params["w1"][H:].astype(jnp.float32),                         # (H, H)
        b1=params["b1"].astype(jnp.float32).reshape(1, H),                # (1, H)
        w2=jnp.zeros((H, Lpad), jnp.float32).at[:, :L].set(
            params["w2"].astype(jnp.float32)),                            # (H, Lpad)
        b2=jnp.zeros((1, Lpad), jnp.float32).at[:, :L].set(
            params["b2"].astype(jnp.float32).reshape(1, L)),              # (1, Lpad)
    )


@functools.partial(jax.jit, static_argnames=("num_labels",))
def start_token_forward(h, sub_token_index, obj_token_index, prepared, *,
                        num_labels):
    """h: (B, S, H) f32 last_hidden_state; indices: (B,) int; prepared: prepare_params()."""
    B, S, H = h.shape
    Lpad = prepared["w2"].shape[-1]

    # Gather only h[i, sub_idx[i], :] and h[i, obj_idx[i], :]: 2*B rows read
    # from HBM, no full-tensor pass.  Clamp: an out-of-range index would
    # otherwise read an arbitrary (but in-bounds-for-XLA) row; PyTorch would
    # have raised instead.
    sub = jnp.clip(sub_token_index.astype(jnp.int32), 0, S - 1)
    obj = jnp.clip(obj_token_index.astype(jnp.int32), 0, S - 1)
    rows_s = jnp.take_along_axis(h, sub[:, None, None], axis=1)[:, 0, :]
    rows_s = rows_s.astype(jnp.float32)                                   # (B, H)
    rows_o = jnp.take_along_axis(h, obj[:, None, None], axis=1)[:, 0, :]
    rows_o = rows_o.astype(jnp.float32)                                   # (B, H)

    # Batch the M dimension into (TM, H) slabs.
    TM = min(128, _round_up(B, 8))
    Bpad = _round_up(B, TM)
    if Bpad != B:
        pad = ((0, Bpad - B), (0, 0))
        rows_s = jnp.pad(rows_s, pad)
        rows_o = jnp.pad(rows_o, pad)

    grid = (Bpad // TM,)

    # Explicit VMEM budget: per-step tiles (rows in, out) are double-buffered;
    # weights use constant block indices and stay resident.  2.5x headroom.
    tile_bytes = (2 * TM * H + TM * Lpad) * 4
    weight_bytes = (2 * H * H + H * Lpad + 8 * H + 8 * Lpad) * 4
    vmem_limit = max(int(2.5 * (2 * tile_bytes + 2 * weight_bytes)), 16 << 20)

    out_pad = pl.pallas_call(
        start_token_kernel,
        out_shape=jax.ShapeDtypeStruct((Bpad, Lpad), jnp.float32),
        grid=grid,
        in_specs=[
            pl.BlockSpec((TM, H), lambda i: (i, 0)),       # gathered sub rows
            pl.BlockSpec((TM, H), lambda i: (i, 0)),       # gathered obj rows
            pl.BlockSpec((H, H), lambda i: (0, 0)),        # w1[:H]   (resident)
            pl.BlockSpec((H, H), lambda i: (0, 0)),        # w1[H:]   (resident)
            pl.BlockSpec((1, H), lambda i: (0, 0)),        # b1       (resident)
            pl.BlockSpec((H, Lpad), lambda i: (0, 0)),     # w2, lane-padded
            pl.BlockSpec((1, Lpad), lambda i: (0, 0)),     # b2, lane-padded
        ],
        out_specs=pl.BlockSpec((TM, Lpad), lambda i: (i, 0)),
        compiler_params=pltpu.CompilerParams(
            dimension_semantics=("parallel",),
            vmem_limit_bytes=vmem_limit),
    )(rows_s, rows_o, prepared["w1s"], prepared["w1o"], prepared["b1"],
      prepared["w2"], prepared["b2"])

    return out_pad[:B, :num_labels]


def init_params(key, hidden, num_labels):
    """Deterministic PyTorch-Linear-style init (uniform +/- 1/sqrt(fan_in))."""
    k1, k2, k3, k4 = jax.random.split(key, 4)
    lim1 = 1.0 / (2.0 * hidden) ** 0.5
    lim2 = 1.0 / hidden ** 0.5
    return dict(
        w1=jax.random.uniform(k1, (2 * hidden, hidden), jnp.float32, -lim1, lim1),
        b1=jax.random.uniform(k2, (hidden,), jnp.float32, -lim1, lim1),
        w2=jax.random.uniform(k3, (hidden, num_labels), jnp.float32, -lim2, lim2),
        b2=jax.random.uniform(k4, (num_labels,), jnp.float32, -lim2, lim2),
    )


def reference_forward(h, sub_idx, obj_idx, params):
    """Pure-f32 JAX mirror of the PyTorch head (concat -> Linear -> ReLU -> Linear)."""
    B = h.shape[0]
    stack = jnp.concatenate(
        [h[jnp.arange(B), sub_idx], h[jnp.arange(B), obj_idx]], axis=-1)   # (B, 2H)
    z = jnp.maximum(stack @ params["w1"] + params["b1"], 0.0)
    return z @ params["w2"] + params["b2"]


if __name__ == "__main__":
    # Small stand-ins for (batch, seq, hidden=1024, num_labels=30).
    B, S, H, L = 2, 8, 32, 30

    key = jax.random.PRNGKey(0)
    k_h, k_sub, k_obj, k_par = jax.random.split(key, 4)

    h = jax.random.normal(k_h, (B, S, H), dtype=jnp.float32)   # last_hidden_state
    sub_token_index = jax.random.randint(k_sub, (B,), 0, S, dtype=jnp.int32)
    obj_token_index = jax.random.randint(k_obj, (B,), 0, S, dtype=jnp.int32)
    params = init_params(k_par, H, L)
    prepared = prepare_params(params)      # hoisted: once per weight update

    out = start_token_forward(h, sub_token_index, obj_token_index, prepared,
                              num_labels=L)
    out = jax.block_until_ready(out)

    ref = reference_forward(h, sub_token_index, obj_token_index, params)
    assert out.shape == (B, L)
    assert jnp.allclose(out, ref, atol=2e-3, rtol=2e-3), \
        float(jnp.max(jnp.abs(out - ref)))

    print("KERNEL_OK")
</pallas_src>

<mosaic_0001>
module attributes {stable_mosaic.version = 11 : i64} {
  func.func @start_token_kernel(%arg0: i32, %arg1: memref<8x32xf32, #tpu.memory_space<vmem>>, %arg2: memref<8x32xf32, #tpu.memory_space<vmem>>, %arg3: memref<32x32xf32, #tpu.memory_space<vmem>>, %arg4: memref<32x32xf32, #tpu.memory_space<vmem>>, %arg5: memref<1x32xf32, #tpu.memory_space<vmem>>, %arg6: memref<32x128xf32, #tpu.memory_space<vmem>>, %arg7: memref<1x128xf32, #tpu.memory_space<vmem>>, %arg8: memref<8x128xf32, #tpu.memory_space<vmem>>) attributes {dimension_semantics = [#tpu.dimension_semantics<parallel>], iteration_bounds = array<i64: 1>, scalar_prefetch = 0 : i64, scratch_operands = 0 : i64, tpu.core_type = #tpu.core_type<tc>, window_params = [{transform_indices = @transform_0, window_bounds = array<i64: 8, 32>}, {transform_indices = @transform_1, window_bounds = array<i64: 8, 32>}, {pipeline_mode = #tpu.pipeline_mode<synchronous>, transform_indices = @transform_2, window_bounds = array<i64: 32, 32>}, {pipeline_mode = #tpu.pipeline_mode<synchronous>, transform_indices = @transform_3, window_bounds = array<i64: 32, 32>}, {pipeline_mode = #tpu.pipeline_mode<synchronous>, transform_indices = @transform_4, window_bounds = array<i64: 1, 32>}, {pipeline_mode = #tpu.pipeline_mode<synchronous>, transform_indices = @transform_5, window_bounds = array<i64: 32, 128>}, {pipeline_mode = #tpu.pipeline_mode<synchronous>, transform_indices = @transform_6, window_bounds = array<i64: 1, 128>}, {transform_indices = @transform_7, window_bounds = array<i64: 8, 128>}]} {
    %c0 = arith.constant 0 : index
    %c0_0 = arith.constant 0 : index
    %0 = vector.load %arg1[%c0, %c0_0] : memref<8x32xf32, #tpu.memory_space<vmem>>, vector<8x32xf32>
    %c0_1 = arith.constant 0 : index
    %c0_2 = arith.constant 0 : index
    %1 = vector.load %arg3[%c0_1, %c0_2] : memref<32x32xf32, #tpu.memory_space<vmem>>, vector<32x32xf32>
    %cst = arith.constant dense<0.000000e+00> : vector<8x32xf32>
    %2 = tpu.matmul %0, %1, %cst {dimension_numbers = #tpu.dot_dimension_numbers<[1], [0], [0], [1], [0, 0, 1, 1], [], []>} : vector<8x32xf32>, vector<32x32xf32>, vector<8x32xf32> -> vector<8x32xf32>
    %c0_3 = arith.constant 0 : index
    %c0_4 = arith.constant 0 : index
    %3 = vector.load %arg2[%c0_3, %c0_4] : memref<8x32xf32, #tpu.memory_space<vmem>>, vector<8x32xf32>
    %c0_5 = arith.constant 0 : index
    %c0_6 = arith.constant 0 : index
    %4 = vector.load %arg4[%c0_5, %c0_6] : memref<32x32xf32, #tpu.memory_space<vmem>>, vector<32x32xf32>
    %cst_7 = arith.constant dense<0.000000e+00> : vector<8x32xf32>
    %5 = tpu.matmul %3, %4, %cst_7 {dimension_numbers = #tpu.dot_dimension_numbers<[1], [0], [0], [1], [0, 0, 1, 1], [], []>} : vector<8x32xf32>, vector<32x32xf32>, vector<8x32xf32> -> vector<8x32xf32>
    %6 = arith.addf %2, %5 : vector<8x32xf32>
    %c0_8 = arith.constant 0 : index
    %c0_9 = arith.constant 0 : index
    %7 = vector.load %arg5[%c0_8, %c0_9] : memref<1x32xf32, #tpu.memory_space<vmem>>, vector<1x32xf32>
    %8 = vector.broadcast %7 : vector<1x32xf32> to vector<8x32xf32>
    %9 = arith.addf %6, %8 : vector<8x32xf32>
    %cst_10 = arith.constant 0.000000e+00 : f32
    %10 = vector.broadcast %cst_10 : f32 to vector<8x32xf32>
    %11 = arith.maximumf %9, %10 : vector<8x32xf32>
    %c0_11 = arith.constant 0 : index
    %c0_12 = arith.constant 0 : index
    %12 = vector.load %arg6[%c0_11, %c0_12] : memref<32x128xf32, #tpu.memory_space<vmem>>, vector<32x128xf32>
    %cst_13 = arith.constant dense<0.000000e+00> : vector<8x128xf32>
    %13 = tpu.matmul %11, %12, %cst_13 {dimension_numbers = #tpu.dot_dimension_numbers<[1], [0], [0], [1], [0, 0, 1, 1], [], []>} : vector<8x32xf32>, vector<32x128xf32>, vector<8x128xf32> -> vector<8x128xf32>
    %c0_14 = arith.constant 0 : index
    %c0_15 = arith.constant 0 : index
    %14 = vector.load %arg7[%c0_14, %c0_15] : memref<1x128xf32, #tpu.memory_space<vmem>>, vector<1x128xf32>
    %15 = vector.broadcast %14 : vector<1x128xf32> to vector<8x128xf32>
    %16 = arith.addf %13, %15 : vector<8x128xf32>
    %c0_16 = arith.constant 0 : index
    %c0_17 = arith.constant 0 : index
    %17 = vector.load %arg8[%c0_16, %c0_17] : memref<8x128xf32, #tpu.memory_space<vmem>>, vector<8x128xf32>
    tpu.vector_store %arg8[%c0_16, %c0_17], %16 {strides = array<i32>} : memref<8x128xf32, #tpu.memory_space<vmem>>, vector<8x128xf32>,
    return
  }
  func.func @transform_0(%arg0: i32) -> (i32, i32) {
    %c0_i32 = arith.constant 0 : i32
    %c0_i32_0 = arith.constant 0 : i32
    return %arg0, %c0_i32 : i32, i32
  }
  func.func @transform_1(%arg0: i32) -> (i32, i32) {
    %c0_i32 = arith.constant 0 : i32
    %c0_i32_0 = arith.constant 0 : i32
    return %arg0, %c0_i32 : i32, i32
  }
  func.func @transform_2(%arg0: i32) -> (i32, i32) {
    %c0_i32 = arith.constant 0 : i32
    %c0_i32_0 = arith.constant 0 : i32
    %c0_i32_1 = arith.constant 0 : i32
    return %c0_i32, %c0_i32_0 : i32, i32
  }
  func.func @transform_3(%arg0: i32) -> (i32, i32) {
    %c0_i32 = arith.constant 0 : i32
    %c0_i32_0 = arith.constant 0 : i32
    %c0_i32_1 = arith.constant 0 : i32
    return %c0_i32, %c0_i32_0 : i32, i32
  }
  func.func @transform_4(%arg0: i32) -> (i32, i32) {
    %c0_i32 = arith.constant 0 : i32
    %c0_i32_0 = arith.constant 0 : i32
    %c0_i32_1 = arith.constant 0 : i32
    return %c0_i32, %c0_i32_0 : i32, i32
  }
  func.func @transform_5(%arg0: i32) -> (i32, i32) {
    %c0_i32 = arith.constant 0 : i32
    %c0_i32_0 = arith.constant 0 : i32
    %c0_i32_1 = arith.constant 0 : i32
    return %c0_i32, %c0_i32_0 : i32, i32
  }
  func.func @transform_6(%arg0: i32) -> (i32, i32) {
    %c0_i32 = arith.constant 0 : i32
    %c0_i32_0 = arith.constant 0 : i32
    %c0_i32_1 = arith.constant 0 : i32
    return %c0_i32, %c0_i32_0 : i32, i32
  }
  func.func @transform_7(%arg0: i32) -> (i32, i32) {
    %c0_i32 = arith.constant 0 : i32
    %c0_i32_0 = arith.constant 0 : i32
    return %arg0, %c0_i32 : i32, i32
  }
}

</mosaic_0001>

<llo_original>
// kernel: start_token_forward.1
$region0: #{start_token_forward.1}
  #allocation0 [shape = 'u32[]', space=smem, size = 0x4, offset = 0x4, fixed_abs, tag = 'smem constant byte address 0x4 - core index']
  #allocation1 [shape = 'u32[144,128]{1,0:T(1,128)}', space=vmem, size = 0x12000, scoped, tag = 'internal scratch']
  %s0 = inlined_call_operand.vmem [shape: f32[8,32], index: 0, kind: input, shape index: {}]
  %s1 = inlined_call_operand.vmem [shape: f32[8,32], index: 1, kind: input, shape index: {}]
  %s2 = inlined_call_operand.vmem [shape: f32[32,32], index: 2, kind: input, shape index: {}]
  %s3 = inlined_call_operand.vmem [shape: f32[32,32], index: 3, kind: input, shape index: {}]
  %s4 = inlined_call_operand.vmem [shape: f32[1,32], index: 4, kind: input, shape index: {}]
  %s5 = inlined_call_operand.vmem [shape: f32[32,128], index: 5, kind: input, shape index: {}]
  %s6 = inlined_call_operand.vmem [shape: f32[1,128], index: 6, kind: input, shape index: {}]
  %s7 = inlined_call_operand.vmem [shape: f32[8,128], index: 7, kind: output, shape index: {}]
  %s8 = sld [smem:[#allocation0]]
  $region38: #{start_token_forward.1} parent=0
    _
  %s10 = ssub.s32 1, %s8
  %s11 = scalar_select 0, %s10, %s8
  // Predicated region
  $region2: #{start_token_forward.1} parent=0 // pred_check
    _
  $region3: #{start_token_forward.1} parent=0 // pred_check_branch
    %13 = sbr.rel (0) target = $region5
  $region4: #{start_token_forward.1} parent=0 // pred_region
    _
  $region5: #{start_token_forward.1} parent=0 // pred_fallthru
    _
  // Predicated region
  $region6: #{start_token_forward.1} parent=0 // pred_check
    _
  $region7: #{start_token_forward.1} parent=0 // pred_check_branch
    %15 = sbr.rel (0) target = $region9
  $region8: #{start_token_forward.1} parent=0 // pred_region
    _
  $region9: #{start_token_forward.1} parent=0 // pred_fallthru
    _
  // Predicated region
  $region10: #{start_token_forward.1} parent=0 // pred_check
    _
  $region11: #{start_token_forward.1} parent=0 // pred_check_branch
    %17 = sbr.rel (0) target = $region13
  $region12: #{start_token_forward.1} parent=0 // pred_region
    _
  $region13: #{start_token_forward.1} parent=0 // pred_fallthru
    _
  // Predicated region
  $region14: #{start_token_forward.1} parent=0 // pred_check
    _
  $region15: #{start_token_forward.1} parent=0 // pred_check_branch
    %19 = sbr.rel (0) target = $region17
  $region16: #{start_token_forward.1} parent=0 // pred_region
    _
  $region17: #{start_token_forward.1} parent=0 // pred_fallthru
    _
  // Predicated region
  $region18: #{start_token_forward.1} parent=0 // pred_check
    _
  $region19: #{start_token_forward.1} parent=0 // pred_check_branch
    %21 = sbr.rel (0) target = $region21
  $region20: #{start_token_forward.1} parent=0 // pred_region
    _
  $region21: #{start_token_forward.1} parent=0 // pred_fallthru
    _
  // Predicated region
  $region22: #{start_token_forward.1} parent=0 // pred_check
    _
  $region23: #{start_token_forward.1} parent=0 // pred_check_branch
    %23 = sbr.rel (0) target = $region25
  $region24: #{start_token_forward.1} parent=0 // pred_region
    _
  $region25: #{start_token_forward.1} parent=0 // pred_fallthru
    _
  // Predicated region
  $region26: #{start_token_forward.1} parent=0 // pred_check
    _
  $region27: #{start_token_forward.1} parent=0 // pred_check_branch
    %25 = sbr.rel (0) target = $region29
  $region28: #{start_token_forward.1} parent=0 // pred_region
    _
  $region29: #{start_token_forward.1} parent=0 // pred_fallthru
    _
  %v26 = vld [vmem:[%s0] sm:$0xff]
  %v27 = vld [vmem:[%s2] sm:$0xff]
  %v28 = vld [vmem:[%s2 + $0x8] sm:$0xff]
  %v29 = vld [vmem:[%s2 + $0x10] sm:$0xff]
  %v30 = vld [vmem:[%s2 + $0x18] sm:$0xff]
  %v31 = vld [vmem:[%s1] sm:$0xff]
  %v32 = vld [vmem:[%s3] sm:$0xff]
  %v33 = vld [vmem:[%s3 + $0x8] sm:$0xff]
  %v34 = vld [vmem:[%s3 + $0x10] sm:$0xff]
  %v35 = vld [vmem:[%s3 + $0x18] sm:$0xff]
  %vm36 = vcmask 261120
  %v38 = vsel %vm36, %v31, 0
  %40 = vmatprep.subr.mxu0 0.0
  %41 = vmatpush1.msra.mxu0 0.0
  %42 = vmatprep.subr.mxu0 0.0
  %43 = vmatpush1.msra.mxu0 0.0
  %44 = vmatprep.subr.mxu0 0.0
  %45 = vmatpush1.msra.mxu0 0.0
  %46 = vmatprep.subr.mxu0 0.0
  %47 = vmatpush1.msra.mxu0 0.0
  %48 = vmatprep.subr.mxu0 0.0
  %49 = vmatpush1.msra.mxu0 0.0
  %50 = vmatprep.subr.mxu0 0.0
  %51 = vmatpush1.msra.mxu0 0.0
  %52 = vmatprep.subr.mxu0 0.0
  %53 = vmatpush1.msra.mxu0 0.0
  %54 = vmatprep.subr.mxu0 0.0
  %55 = vmatpush1.msra.mxu0 0.0
  %56 = vmatprep.subr.mxu0 0.0
  %57 = vmatpush1.msra.mxu0 0.0
  %58 = vmatprep.subr.mxu0 0.0
  %59 = vmatpush1.msra.mxu0 0.0
  %60 = vmatprep.subr.mxu0 0.0
  %61 = vmatpush1.msra.mxu0 0.0
  %62 = vmatprep.subr.mxu0 0.0
  %63 = vmatpush1.msra.mxu0 0.0
  %64 = vmatprep.subr.mxu0 0.0
  %65 = vmatpush1.msra.mxu0 %v35
  %66 = vmatprep.subr.mxu0 0.0
  %67 = vmatpush1.msra.mxu0 %v34
  %68 = vmatprep.subr.mxu0 0.0
  %69 = vmatpush1.msra.mxu0 %v33
  %70 = vmatprep.subr.mxu0 0.0
  %71 = vmatpush1.msra.mxu0 %v32
  %72 = vmatprep.subr.mxu0 0.0
  %73 = vmatpush2.msra.mxu0 0.0
  %74 = vmatprep.subr.mxu0 0.0
  %75 = vmatpush2.msra.mxu0 0.0
  %76 = vmatprep.subr.mxu0 0.0
  %77 = vmatpush2.msra.mxu0 0.0
  %78 = vmatprep.subr.mxu0 0.0
  %79 = vmatpush2.msra.mxu0 0.0
  %80 = vmatprep.subr.mxu0 0.0
  %81 = vmatpush2.msra.mxu0 0.0
  %82 = vmatprep.subr.mxu0 0.0
  %83 = vmatpush2.msra.mxu0 0.0
  %84 = vmatprep.subr.mxu0 0.0
  %85 = vmatpush2.msra.mxu0 0.0
  %86 = vmatprep.subr.mxu0 0.0
  %87 = vmatpush2.msra.mxu0 0.0
  %88 = vmatprep.subr.mxu0 0.0
  %89 = vmatpush2.msra.mxu0 0.0
  %90 = vmatprep.subr.mxu0 0.0
  %91 = vmatpush2.msra.mxu0 0.0
  %92 = vmatprep.subr.mxu0 0.0
  %93 = vmatpush2.msra.mxu0 0.0
  %94 = vmatprep.subr.mxu0 0.0
  %95 = vmatpush2.msra.mxu0 0.0
  %96 = vmatprep.subr.mxu0 0.0
  %97 = vmatpush2.msra.mxu0 0.0
  %98 = vmatprep.subr.mxu0 0.0
  %99 = vmatpush2.msra.mxu0 0.0
  %100 = vmatprep.subr.mxu0 0.0
  %101 = vmatpush2.msra.mxu0 0.0
  %102 = vmatprep.subr.mxu0 0.0
  %103 = vmatpush2.msra.mxu0 0.0
  %104 = vmatprep.mubr.f32.mxu0 0.0
  %105 = vmatmul.mubr.f32.gmra.mxu0 %v38
  %v106 = vpop.f32.mrf.mxu0
  %v107 = vadd.f32 0.0, %v106
  %v108 = vpop.f32.mrf.mxu0
  %109 = vdwg.mxu0
  %v111 = vsel %vm36, %v26, 0
  %113 = vmatprep.subr.mxu0 0.0
  %114 = vmatpush1.msra.mxu0 0.0
  %115 = vmatprep.subr.mxu0 0.0
  %116 = vmatpush1.msra.mxu0 0.0
  %117 = vmatprep.subr.mxu0 0.0
  %118 = vmatpush1.msra.mxu0 0.0
  %119 = vmatprep.subr.mxu0 0.0
  %120 = vmatpush1.msra.mxu0 0.0
  %121 = vmatprep.subr.mxu0 0.0
  %122 = vmatpush1.msra.mxu0 0.0
  %123 = vmatprep.subr.mxu0 0.0
  %124 = vmatpush1.msra.mxu0 0.0
  %125 = vmatprep.subr.mxu0 0.0
  %126 = vmatpush1.msra.mxu0 0.0
  %127 = vmatprep.subr.mxu0 0.0
  %128 = vmatpush1.msra.mxu0 0.0
  %129 = vmatprep.subr.mxu0 0.0
  %130 = vmatpush1.msra.mxu0 0.0
  %131 = vmatprep.subr.mxu0 0.0
  %132 = vmatpush1.msra.mxu0 0.0
  %133 = vmatprep.subr.mxu0 0.0
  %134 = vmatpush1.msra.mxu0 0.0
  %135 = vmatprep.subr.mxu0 0.0
  %136 = vmatpush1.msra.mxu0 0.0
  %137 = vmatprep.subr.mxu0 0.0
  %138 = vmatpush1.msra.mxu0 %v30
  %139 = vmatprep.subr.mxu0 0.0
  %140 = vmatpush1.msra.mxu0 %v29
  %141 = vmatprep.subr.mxu0 0.0
  %142 = vmatpush1.msra.mxu0 %v28
  %143 = vmatprep.subr.mxu0 0.0
  %144 = vmatpush1.msra.mxu0 %v27
  %145 = vmatprep.subr.mxu0 0.0
  %146 = vmatpush2.msra.mxu0 0.0
  %147 = vmatprep.subr.mxu0 0.0
  %148 = vmatpush2.msra.mxu0 0.0
  %149 = vmatprep.subr.mxu0 0.0
  %150 = vmatpush2.msra.mxu0 0.0
  %151 = vmatprep.subr.mxu0 0.0
  %152 = vmatpush2.msra.mxu0 0.0
  %153 = vmatprep.subr.mxu0 0.0
  %154 = vmatpush2.msra.mxu0 0.0
  %155 = vmatprep.subr.mxu0 0.0
  %156 = vmatpush2.msra.mxu0 0.0
  %157 = vmatprep.subr.mxu0 0.0
  %158 = vmatpush2.msra.mxu0 0.0
  %159 = vmatprep.subr.mxu0 0.0
  %160 = vmatpush2.msra.mxu0 0.0
  %161 = vmatprep.subr.mxu0 0.0
  %162 = vmatpush2.msra.mxu0 0.0
  %163 = vmatprep.subr.mxu0 0.0
  %164 = vmatpush2.msra.mxu0 0.0
  %165 = vmatprep.subr.mxu0 0.0
  %166 = vmatpush2.msra.mxu0 0.0
  %167 = vmatprep.subr.mxu0 0.0
  %168 = vmatpush2.msra.mxu0 0.0
  %169 = vmatprep.subr.mxu0 0.0
  %170 = vmatpush2.msra.mxu0 0.0
  %171 = vmatprep.subr.mxu0 0.0
  %172 = vmatpush2.msra.mxu0 0.0
  %173 = vmatprep.subr.mxu0 0.0
  %174 = vmatpush2.msra.mxu0 0.0
  %175 = vmatprep.subr.mxu0 0.0
  %176 = vmatpush2.msra.mxu0 0.0
  %177 = vmatprep.mubr.f32.mxu0 0.0
  %178 = vmatmul.mubr.f32.gmra.mxu0 %v111
  %v179 = vpop.f32.mrf.mxu0
  %v180 = vadd.f32 %v107, %v179
  %v181 = vpop.f32.mrf.mxu0
  %182 = vdwg.mxu0
  %v183 = vld [vmem:[%s4] sm:$0x1]
  %v185 = vlaneseq
  %v186 = vshrl.u32 %v185, 7
  %v187 = vsub.s32 0, %v186
  %v188 = vrot.slane %v183, %v187
  %v190 = vadd.f32 %v180, %v188
  %v191 = vmax.f32 %v190, 0.0
  %v192 = vld [vmem:[%s5] sm:$0xff]
  %v193 = vld [vmem:[%s5 + $0x8] sm:$0xff]
  %v194 = vld [vmem:[%s5 + $0x10] sm:$0xff]
  %v195 = vld [vmem:[%s5 + $0x18] sm:$0xff]
  %v196 = vld [vmem:[%s6] sm:$0x1]
  %v198 = vlaneseq
  %v199 = vshrl.u32 %v198, 7
  %v200 = vsub.s32 0, %v199
  %v201 = vrot.slane %v196, %v200
  %v204 = vsel %vm36, %v191, 0
  %206 = vmatprep.subr.mxu0 0.0
  %207 = vmatpush1.msra.mxu0 0.0
  %208 = vmatprep.subr.mxu0 0.0
  %209 = vmatpush1.msra.mxu0 0.0
  %210 = vmatprep.subr.mxu0 0.0
  %211 = vmatpush1.msra.mxu0 0.0
  %212 = vmatprep.subr.mxu0 0.0
  %213 = vmatpush1.msra.mxu0 0.0
  %214 = vmatprep.subr.mxu0 0.0
  %215 = vmatpush1.msra.mxu0 0.0
  %216 = vmatprep.subr.mxu0 0.0
  %217 = vmatpush1.msra.mxu0 0.0
  %218 = vmatprep.subr.mxu0 0.0
  %219 = vmatpush1.msra.mxu0 0.0
  %220 = vmatprep.subr.mxu0 0.0
  %221 = vmatpush1.msra.mxu0 0.0
  %222 = vmatprep.subr.mxu0 0.0
  %223 = vmatpush1.msra.mxu0 0.0
  %224 = vmatprep.subr.mxu0 0.0
  %225 = vmatpush1.msra.mxu0 0.0
  %226 = vmatprep.subr.mxu0 0.0
  %227 = vmatpush1.msra.mxu0 0.0
  %228 = vmatprep.subr.mxu0 0.0
  %229 = vmatpush1.msra.mxu0 0.0
  %230 = vmatprep.subr.mxu0 0.0
  %231 = vmatpush1.msra.mxu0 %v195
  %232 = vmatprep.subr.mxu0 0.0
  %233 = vmatpush1.msra.mxu0 %v194
  %234 = vmatprep.subr.mxu0 0.0
  %235 = vmatpush1.msra.mxu0 %v193
  %236 = vmatprep.subr.mxu0 0.0
  %237 = vmatpush1.msra.mxu0 %v192
  %238 = vmatprep.subr.mxu0 0.0
  %239 = vmatpush2.msra.mxu0 0.0
  %240 = vmatprep.subr.mxu0 0.0
  %241 = vmatpush2.msra.mxu0 0.0
  %242 = vmatprep.subr.mxu0 0.0
  %243 = vmatpush2.msra.mxu0 0.0
  %244 = vmatprep.subr.mxu0 0.0
  %245 = vmatpush2.msra.mxu0 0.0
  %246 = vmatprep.subr.mxu0 0.0
  %247 = vmatpush2.msra.mxu0 0.0
  %248 = vmatprep.subr.mxu0 0.0
  %249 = vmatpush2.msra.mxu0 0.0
  %250 = vmatprep.subr.mxu0 0.0
  %251 = vmatpush2.msra.mxu0 0.0
  %252 = vmatprep.subr.mxu0 0.0
  %253 = vmatpush2.msra.mxu0 0.0
  %254 = vmatprep.subr.mxu0 0.0
  %255 = vmatpush2.msra.mxu0 0.0
  %256 = vmatprep.subr.mxu0 0.0
  %257 = vmatpush2.msra.mxu0 0.0
  %258 = vmatprep.subr.mxu0 0.0
  %259 = vmatpush2.msra.mxu0 0.0
  %260 = vmatprep.subr.mxu0 0.0
  %261 = vmatpush2.msra.mxu0 0.0
  %262 = vmatprep.subr.mxu0 0.0
  %263 = vmatpush2.msra.mxu0 0.0
  %264 = vmatprep.subr.mxu0 0.0
  %265 = vmatpush2.msra.mxu0 0.0
  %266 = vmatprep.subr.mxu0 0.0
  %267 = vmatpush2.msra.mxu0 0.0
  %268 = vmatprep.subr.mxu0 0.0
  %269 = vmatpush2.msra.mxu0 0.0
  %270 = vmatprep.mubr.f32.mxu0 0.0
  %271 = vmatmul.mubr.f32.gmra.mxu0 %v204
  %v272 = vpop.f32.mrf.mxu0
  %v273 = vadd.f32 %v201, %v272
  %v274 = vpop.f32.mrf.mxu0
  %275 = vdwg.mxu0
  %276 = vst [vmem:[%s7] sm:$0xff] %v273
  // Predicated region
  $region30: #{start_token_forward.1} parent=0 // pred_check
    _
  $region31: #{start_token_forward.1} parent=0 // pred_check_branch
    %278 = sbr.rel (0) target = $region33
  $region32: #{start_token_forward.1} parent=0 // pred_region
    _
  $region33: #{start_token_forward.1} parent=0 // pred_fallthru
    _
  // Predicated region
  $region34: #{start_token_forward.1} parent=0 // pred_check
    _
  $region35: #{start_token_forward.1} parent=0 // pred_check_branch
    %280 = sbr.rel (0) target = $region37
  $region36: #{start_token_forward.1} parent=0 // pred_region
    _
  $region37: #{start_token_forward.1} parent=0 // pred_fallthru
    _

</llo_original>
